<compile_context>
chip_gen: v7x
topology: tpu7x:2x2x1
jax: 0.10.0
libtpu: 0.0.40
codegen_flags: <defaults>
</compile_context>

<pallas_src>
import math

import jax
import jax.numpy as jnp
from jax.experimental import pallas as pl
from jax.experimental.pallas import tpu as pltpu


def _linear_kernel(x_ref, w_ref, b_ref, o_ref):
    # x_ref: (TM, H), w_ref: (H, L), b_ref: (1, L), o_ref: (TM, L)
    acc = jnp.dot(x_ref[...], w_ref[...], preferred_element_type=jnp.float32)
    acc = acc + b_ref[...].astype(jnp.float32)  # broadcast bias over rows
    o_ref[...] = acc.astype(o_ref.dtype)


def _round_up(v, mult):
    return ((v + mult - 1) // mult) * mult


def roformer_classification_head(
    x,
    weight,
    bias,
    *,
    compute_dtype=None,
    tile_budget_bytes=4 * 1024 * 1024,
):
    """y = x @ weight.T + bias over the last dim of x (torch nn.Linear semantics).

    x:      (..., hidden)
    weight: (num_labels, hidden)   -- PyTorch nn.Linear convention
    bias:   (num_labels,)
    compute_dtype: optional dtype (e.g. jnp.bfloat16) for x/weight inside the
        kernel; accumulation stays f32, output returned in x.dtype.
    returns (..., num_labels)
    """
    *lead, hidden = x.shape
    num_labels, k_in = weight.shape
    assert k_in == hidden, "weight shape must be (num_labels, hidden)"

    m = math.prod(lead) if lead else 1
    out_dtype = x.dtype

    x2d = x.reshape(m, hidden)
    w_t = weight.T                      # (hidden, num_labels), MXU-friendly
    b2d = bias.reshape(1, num_labels)

    if compute_dtype is not None:
        x2d = x2d.astype(compute_dtype)
        w_t = w_t.astype(compute_dtype)

    in_itemsize = jnp.dtype(x2d.dtype).itemsize
    out_itemsize = jnp.dtype(out_dtype).itemsize

    # Tile size for the M axis: as large as the per-tile VMEM budget allows,
    # multiple of 8 (sublane), capped, and no larger than the (rounded) row count.
    tm = tile_budget_bytes // max(1, hidden * in_itemsize)
    tm = max(8, min(tm - (tm % 8), 4096))
    tm = min(tm, _round_up(m, 8))
    grid_m = pl.cdiv(m, tm)             # partial last block handled by Pallas

    # VMEM budget: double-buffered x + out tiles, plus the resident weight/bias.
    live_vmem = (
        2 * tm * hidden * in_itemsize
        + 2 * tm * num_labels * out_itemsize
        + 2 * (hidden + 1) * num_labels * in_itemsize
    )
    vmem_limit = int(min(max(2 * live_vmem, 32 * 1024 * 1024), 48 * 1024 * 1024))

    cost = pl.CostEstimate(
        flops=2 * m * hidden * num_labels,
        transcendentals=0,
        bytes_accessed=(
            m * hidden * in_itemsize
            + hidden * num_labels * in_itemsize
            + num_labels * in_itemsize
            + m * num_labels * out_itemsize
        ),
    )

    out = pl.pallas_call(
        _linear_kernel,
        out_shape=jax.ShapeDtypeStruct((m, num_labels), out_dtype),
        grid=(grid_m,),
        in_specs=[
            pl.BlockSpec((tm, hidden), lambda i: (i, 0)),            # streamed
            pl.BlockSpec((hidden, num_labels), lambda i: (0, 0)),    # resident
            pl.BlockSpec((1, num_labels), lambda i: (0, 0)),         # resident
        ],
        out_specs=pl.BlockSpec((tm, num_labels), lambda i: (i, 0)),
        compiler_params=pltpu.CompilerParams(
            dimension_semantics=("parallel",),   # megacore sharding on v7x
            vmem_limit_bytes=vmem_limit,
        ),
        cost_estimate=cost,
    )(x2d, w_t, b2d)

    return out.reshape(*lead, num_labels)


if __name__ == "__main__":
    # Small shapes consistent with the module:
    #   project_dim (hidden) = 32, scale = 1, num_labels = 8
    #   x: (batch=2, seq=8, hidden=32)
    batch, seq, hidden, num_labels = 2, 8, 32, 8

    key = jax.random.PRNGKey(0)
    kx, kw, kb = jax.random.split(key, 3)

    x = jax.random.normal(kx, (batch, seq, hidden), dtype=jnp.float32)

    # Deterministic nn.Linear-style init: U(-1/sqrt(fan_in), 1/sqrt(fan_in))
    bound = 1.0 / (hidden ** 0.5)
    weight = jax.random.uniform(
        kw, (num_labels, hidden), minval=-bound, maxval=bound, dtype=jnp.float32
    )
    bias = jax.random.uniform(
        kb, (num_labels,), minval=-bound, maxval=bound, dtype=jnp.float32
    )

    y = roformer_classification_head(x, weight, bias)
    y = jax.block_until_ready(y)

    # Reference check in plain JAX (same math as torch nn.Linear).
    y_ref = x @ weight.T + bias
    assert y.shape == (batch, seq, num_labels)
    assert jnp.allclose(y, y_ref, atol=1e-5, rtol=1e-5)

    print("KERNEL_OK")
</pallas_src>

<mosaic_0001>
module attributes {stable_mosaic.version = 11 : i64} {
  func.func @_linear_kernel(%arg0: i32, %arg1: memref<16x32xf32, #tpu.memory_space<vmem>>, %arg2: memref<32x8xf32, #tpu.memory_space<vmem>>, %arg3: memref<1x8xf32, #tpu.memory_space<vmem>>, %arg4: memref<16x8xf32, #tpu.memory_space<vmem>>) attributes {dimension_semantics = [#tpu.dimension_semantics<parallel>], iteration_bounds = array<i64: 1>, scalar_prefetch = 0 : i64, scratch_operands = 0 : i64, tpu.core_type = #tpu.core_type<tc>, window_params = [{transform_indices = @transform_0, window_bounds = array<i64: 16, 32>}, {pipeline_mode = #tpu.pipeline_mode<synchronous>, transform_indices = @transform_1, window_bounds = array<i64: 32, 8>}, {pipeline_mode = #tpu.pipeline_mode<synchronous>, transform_indices = @transform_2, window_bounds = array<i64: 1, 8>}, {transform_indices = @transform_3, window_bounds = array<i64: 16, 8>}]} {
    %c0 = arith.constant 0 : index
    %c0_0 = arith.constant 0 : index
    %0 = vector.load %arg1[%c0, %c0_0] : memref<16x32xf32, #tpu.memory_space<vmem>>, vector<16x32xf32>
    %c0_1 = arith.constant 0 : index
    %c0_2 = arith.constant 0 : index
    %1 = vector.load %arg2[%c0_1, %c0_2] : memref<32x8xf32, #tpu.memory_space<vmem>>, vector<32x8xf32>
    %cst = arith.constant dense<0.000000e+00> : vector<16x8xf32>
    %2 = tpu.matmul %0, %1, %cst {dimension_numbers = #tpu.dot_dimension_numbers<[1], [0], [0], [1], [0, 0, 1, 1], [], []>} : vector<16x32xf32>, vector<32x8xf32>, vector<16x8xf32> -> vector<16x8xf32>
    %c0_3 = arith.constant 0 : index
    %c0_4 = arith.constant 0 : index
    %3 = vector.load %arg3[%c0_3, %c0_4] : memref<1x8xf32, #tpu.memory_space<vmem>>, vector<1x8xf32>
    %4 = vector.broadcast %3 : vector<1x8xf32> to vector<16x8xf32>
    %5 = arith.addf %2, %4 : vector<16x8xf32>
    %c0_5 = arith.constant 0 : index
    %c0_6 = arith.constant 0 : index
    %6 = vector.load %arg4[%c0_5, %c0_6] : memref<16x8xf32, #tpu.memory_space<vmem>>, vector<16x8xf32>
    tpu.vector_store %arg4[%c0_5, %c0_6], %5 {strides = array<i32>} : memref<16x8xf32, #tpu.memory_space<vmem>>, vector<16x8xf32>,
    return
  }
  func.func @transform_0(%arg0: i32) -> (i32, i32) {
    %c0_i32 = arith.constant 0 : i32
    %c0_i32_0 = arith.constant 0 : i32
    return %arg0, %c0_i32 : i32, i32
  }
  func.func @transform_1(%arg0: i32) -> (i32, i32) {
    %c0_i32 = arith.constant 0 : i32
    %c0_i32_0 = arith.constant 0 : i32
    %c0_i32_1 = arith.constant 0 : i32
    return %c0_i32, %c0_i32_0 : i32, i32
  }
  func.func @transform_2(%arg0: i32) -> (i32, i32) {
    %c0_i32 = arith.constant 0 : i32
    %c0_i32_0 = arith.constant 0 : i32
    %c0_i32_1 = arith.constant 0 : i32
    return %c0_i32, %c0_i32_0 : i32, i32
  }
  func.func @transform_3(%arg0: i32) -> (i32, i32) {
    %c0_i32 = arith.constant 0 : i32
    %c0_i32_0 = arith.constant 0 : i32
    return %arg0, %c0_i32 : i32, i32
  }
}

</mosaic_0001>

<llo_original>
// kernel: tpu_custom_call.1
$region0: #{tpu_custom_call.1}
  #allocation0 [shape = 'u32[]', space=smem, size = 0x4, offset = 0x4, fixed_abs, tag = 'smem constant byte address 0x4 - core index']
  #allocation1 [shape = 'u32[144,128]{1,0:T(1,128)}', space=vmem, size = 0x12000, scoped, tag = 'internal scratch']
  %s0 = inlined_call_operand.vmem [shape: f32[16,32], index: 0, kind: input, shape index: {}]
  %s1 = inlined_call_operand.vmem [shape: f32[32,8], index: 1, kind: input, shape index: {}]
  %s2 = inlined_call_operand.vmem [shape: f32[1,8], index: 2, kind: input, shape index: {}]
  %s3 = inlined_call_operand.vmem [shape: f32[16,8], index: 3, kind: output, shape index: {}]
  %s4 = sld [smem:[#allocation0]]
  $region22: #{tpu_custom_call.1} parent=0
    _
  %s6 = ssub.s32 1, %s4
  %s7 = scalar_select 0, %s6, %s4
  // Predicated region
  $region2: #{tpu_custom_call.1} parent=0 // pred_check
    _
  $region3: #{tpu_custom_call.1} parent=0 // pred_check_branch
    %9 = sbr.rel (0) target = $region5
  $region4: #{tpu_custom_call.1} parent=0 // pred_region
    _
  $region5: #{tpu_custom_call.1} parent=0 // pred_fallthru
    _
  // Predicated region
  $region6: #{tpu_custom_call.1} parent=0 // pred_check
    _
  $region7: #{tpu_custom_call.1} parent=0 // pred_check_branch
    %11 = sbr.rel (0) target = $region9
  $region8: #{tpu_custom_call.1} parent=0 // pred_region
    _
  $region9: #{tpu_custom_call.1} parent=0 // pred_fallthru
    _
  // Predicated region
  $region10: #{tpu_custom_call.1} parent=0 // pred_check
    _
  $region11: #{tpu_custom_call.1} parent=0 // pred_check_branch
    %13 = sbr.rel (0) target = $region13
  $region12: #{tpu_custom_call.1} parent=0 // pred_region
    _
  $region13: #{tpu_custom_call.1} parent=0 // pred_fallthru
    _
  %v14 = vld [vmem:[%s0] sm:$0xff]
  %v15 = vld [vmem:[%s0 + $0x8] sm:$0xff]
  %v16 = vld [vmem:[%s1] sm:$0xff]
  %v17 = vld [vmem:[%s1 + $0x8] sm:$0xff]
  %v18 = vld [vmem:[%s1 + $0x10] sm:$0xff]
  %v19 = vld [vmem:[%s1 + $0x18] sm:$0xff]
  %v20 = vld [vmem:[%s2] sm:$0x1]
  %v22 = vlaneseq
  %v23 = vshrl.u32 %v22, 7
  %v24 = vsub.s32 0, %v23
  %v25 = vrot.slane %v20, %v24
  %vm27 = vcmask 261120
  %v29 = vsel %vm27, %v14, 0
  %v32 = vsel %vm27, %v15, 0
  %34 = vmatprep.subr.mxu0 0.0
  %35 = vmatpush1.msra.mxu0 %v16
  %36 = vmatprep.subr.mxu0 0.0
  %37 = vmatpush1.msra.mxu0 %v17
  %38 = vmatprep.subr.mxu0 0.0
  %39 = vmatpush1.msra.mxu0 %v18
  %40 = vmatprep.subr.mxu0 0.0
  %41 = vmatpush1.msra.mxu0 %v19
  %42 = vmatprep.subr.mxu0 0.0
  %43 = vmatpush1.msra.mxu0 0.0
  %44 = vmatprep.subr.mxu0 0.0
  %45 = vmatpush1.msra.mxu0 0.0
  %46 = vmatprep.subr.mxu0 0.0
  %47 = vmatpush1.msra.mxu0 0.0
  %48 = vmatprep.subr.mxu0 0.0
  %49 = vmatpush1.msra.mxu0 0.0
  %50 = vmatprep.subr.mxu0 0.0
  %51 = vmatpush1.msra.mxu0 0.0
  %52 = vmatprep.subr.mxu0 0.0
  %53 = vmatpush1.msra.mxu0 0.0
  %54 = vmatprep.subr.mxu0 0.0
  %55 = vmatpush1.msra.mxu0 0.0
  %56 = vmatprep.subr.mxu0 0.0
  %57 = vmatpush1.msra.mxu0 0.0
  %58 = vmatprep.subr.mxu0 0.0
  %59 = vmatpush1.msra.mxu0 0.0
  %60 = vmatprep.subr.mxu0 0.0
  %61 = vmatpush1.msra.mxu0 0.0
  %62 = vmatprep.subr.mxu0 0.0
  %63 = vmatpush1.msra.mxu0 0.0
  %64 = vmatprep.subr.mxu0 0.0
  %65 = vmatpush1.msra.mxu0 0.0
  %66 = vmatprep.subr.mxu0 0.0
  %67 = vmatpush1.msra.mxu0 0.0
  %68 = vmatprep.subr.mxu0 0.0
  %69 = vmatpush1.msra.mxu0 0.0
  %70 = vmatprep.subr.mxu0 0.0
  %71 = vmatpush1.msra.mxu0 0.0
  %72 = vmatprep.subr.mxu0 0.0
  %73 = vmatpush1.msra.mxu0 0.0
  %74 = vmatprep.subr.mxu0 0.0
  %75 = vmatpush1.msra.mxu0 0.0
  %76 = vmatprep.subr.mxu0 0.0
  %77 = vmatpush1.msra.mxu0 0.0
  %78 = vmatprep.subr.mxu0 0.0
  %79 = vmatpush1.msra.mxu0 0.0
  %80 = vmatprep.subr.mxu0 0.0
  %81 = vmatpush1.msra.mxu0 0.0
  %82 = vmatprep.subr.mxu0 0.0
  %83 = vmatpush1.msra.mxu0 0.0
  %84 = vmatprep.subr.mxu0 0.0
  %85 = vmatpush1.msra.mxu0 0.0
  %86 = vmatprep.subr.mxu0 0.0
  %87 = vmatpush1.msra.mxu0 0.0
  %88 = vmatprep.subr.mxu0 0.0
  %89 = vmatpush1.msra.mxu0 0.0
  %90 = vmatprep.subr.mxu0 0.0
  %91 = vmatpush1.msra.mxu0 0.0
  %92 = vmatprep.subr.mxu0 0.0
  %93 = vmatpush1.msra.mxu0 0.0
  %94 = vmatprep.subr.mxu0 0.0
  %95 = vmatpush1.msra.mxu0 0.0
  %96 = vmatprep.subr.mxu0 0.0
  %97 = vmatpush1.msra.mxu0 0.0
  %98 = vmatprep.mubr.f32.mxu0 0.0
  %99 = vmatmul.mubr.f32.gmra.mrb[0].mxu0 %v29
  %v100 = vpop.f32.mrb[0].mxu0
  %v101 = vadd.f32 %v25, %v100
  %v102 = vpop.f32.mrb[0].mxu0
  %103 = vmatprep.mubr.f32.mxu0 0.0
  %104 = vmatmul.mubr.f32.gmra.mrb[0].mxu0 %v32
  %v105 = vpop.f32.mrb[0].mxu0
  %v106 = vadd.f32 %v25, %v105
  %v107 = vpop.f32.mrb[0].mxu0
  %108 = vdwg.mxu0
  %vm109 = vcmask 64512
  %110 = vst.msk [vmem:[%s3] sm:$0xff] %vm109, %v101
  %111 = vst.msk [vmem:[%s3 + $0x8] sm:$0xff] %vm109, %v106
  // Predicated region
  $region14: #{tpu_custom_call.1} parent=0 // pred_check
    _
  $region15: #{tpu_custom_call.1} parent=0 // pred_check_branch
    %113 = sbr.rel (0) target = $region17
  $region16: #{tpu_custom_call.1} parent=0 // pred_region
    _
  $region17: #{tpu_custom_call.1} parent=0 // pred_fallthru
    _
  // Predicated region
  $region18: #{tpu_custom_call.1} parent=0 // pred_check
    _
  $region19: #{tpu_custom_call.1} parent=0 // pred_check_branch
    %115 = sbr.rel (0) target = $region21
  $region20: #{tpu_custom_call.1} parent=0 // pred_region
    _
  $region21: #{tpu_custom_call.1} parent=0 // pred_fallthru
    _

</llo_original>
